<compile_context>
chip_gen: v7x
topology: tpu7x:2x2x1
jax: 0.10.0
libtpu: 0.0.40
codegen_flags: <defaults>
</compile_context>

<pallas_src>
import functools

import jax
import jax.numpy as jnp
from jax.experimental import pallas as pl
from jax.experimental.pallas import tpu as pltpu


def decoder_kernel(x_ref, w1_ref, b1_ref, w2_ref, b2_ref, out_ref):
    # fc1: (TM,1) * (1,128) + (1,128) — broadcast multiply on the VPU
    # (a K=1 matmul would waste the MXU).
    h = x_ref[...] * w1_ref[...] + b1_ref[...]            # (TM, 128)
    h = jnp.maximum(h, 0.0)                                # ReLU
    # fc2: (TM,128) @ (128,F) + (1,F) — MXU matmul, f32 accumulate.
    y = jnp.dot(h, w2_ref[...],
                preferred_element_type=jnp.float32,
                precision=jax.lax.Precision.HIGHEST)
    out_ref[...] = (y + b2_ref[...]).astype(out_ref.dtype)


def _round_up(x, m):
    return ((x + m - 1) // m) * m


@functools.partial(jax.jit, static_argnames=("tm",))
def classical_decoder(x, w1, b1, w2, b2, *, tm=1024):
    """y = relu(x @ w1 + b1) @ w2 + b2.

    x: (B, 1) f32; w1: (1, 128); b1: (1, 128); w2: (128, F); b2: (1, F).
    Weights are stored transposed vs torch so the kernel computes x @ W + b.
    """
    B = x.shape[0]
    H = w1.shape[1]                      # 128
    F = w2.shape[1]                      # kept at its true width (no lane pad)

    # --- Batch tiling: TM multiple of 8; minimal row padding. ---
    Bp = _round_up(B, 8)
    TM = _round_up(min(tm, Bp), 8)
    # v7x megacore: if everything fits in one tile, try to split into >=2 steps.
    if Bp // TM < 2 and TM > 8:
        TM = _round_up((TM + 1) // 2, 8)

    # --- VMEM budget (portable: stay under v5e's 16 MiB scoped default). ---
    def _vmem_bytes(tm_):
        # double-buffered out + x tiles, resident w1/b1/w2/b2
        return 4 * (2 * tm_ * F + 2 * tm_ * 1 + H * F + 2 * H + F)
    budget = 12 << 20
    while TM > 8 and _vmem_bytes(TM) > budget:
        TM = _round_up(TM // 2, 8)

    Bp = _round_up(Bp, TM)
    if Bp != B:
        xp = jnp.zeros((Bp, 1), x.dtype).at[:B, :].set(x)
    else:
        xp = x

    grid = (Bp // TM,)

    cost = pl.CostEstimate(
        flops=2 * Bp * H * F + 3 * Bp * H,
        transcendentals=0,
        bytes_accessed=4 * (Bp * 1 + Bp * F + H * F + 2 * H + F),
    )

    out = pl.pallas_call(
        decoder_kernel,
        out_shape=jax.ShapeDtypeStruct((Bp, F), jnp.float32),
        grid_spec=pl.GridSpec(
            grid=grid,
            in_specs=[
                pl.BlockSpec((TM, 1), lambda i: (i, 0)),   # x tile per grid step
                pl.BlockSpec((1, H),  lambda i: (0, 0)),   # w1 resident
                pl.BlockSpec((1, H),  lambda i: (0, 0)),   # b1 resident
                pl.BlockSpec((H, F),  lambda i: (0, 0)),   # w2 resident (true F)
                pl.BlockSpec((1, F),  lambda i: (0, 0)),   # b2 resident (true F)
            ],
            out_specs=pl.BlockSpec((TM, F), lambda i: (i, 0)),
        ),
        compiler_params=pltpu.CompilerParams(
            dimension_semantics=("parallel",),             # shard batch across TCs
        ),
        cost_estimate=cost,
    )(xp, w1, b1, w2, b2)

    # Only a row slice, and only when batch padding was actually needed.
    return out if Bp == B else out[:B]


def init_params(key, n_features):
    # Mimics nn.Linear default init: uniform(-1/sqrt(fan_in), 1/sqrt(fan_in)).
    k1, k2, k3, k4 = jax.random.split(key, 4)
    bound1 = 1.0 / jnp.sqrt(1.0)
    bound2 = 1.0 / jnp.sqrt(128.0)
    w1 = jax.random.uniform(k1, (1, 128), jnp.float32, -bound1, bound1)
    b1 = jax.random.uniform(k2, (1, 128), jnp.float32, -bound1, bound1)
    w2 = jax.random.uniform(k3, (128, n_features), jnp.float32, -bound2, bound2)
    b2 = jax.random.uniform(k4, (1, n_features), jnp.float32, -bound2, bound2)
    return w1, b1, w2, b2


if __name__ == "__main__":
    key = jax.random.PRNGKey(0)
    n_features = 32
    batch = 8

    kx, kp = jax.random.split(key)
    x = jax.random.normal(kx, (batch, 1), jnp.float32)
    w1, b1, w2, b2 = init_params(kp, n_features)

    out = classical_decoder(x, w1, b1, w2, b2)
    out = jax.block_until_ready(out)

    # Pure-JAX reference of the forward pass.
    ref = jnp.maximum(x @ w1 + b1, 0.0) @ w2 + b2
    assert out.shape == (batch, n_features), out.shape
    assert jnp.allclose(out, ref, atol=1e-5, rtol=1e-5)

    print("KERNEL_OK")
</pallas_src>

<mosaic_0001>
module attributes {stable_mosaic.version = 11 : i64} {
  func.func @decoder_kernel(%arg0: i32, %arg1: memref<8x1xf32, #tpu.memory_space<vmem>>, %arg2: memref<1x128xf32, #tpu.memory_space<vmem>>, %arg3: memref<1x128xf32, #tpu.memory_space<vmem>>, %arg4: memref<128x32xf32, #tpu.memory_space<vmem>>, %arg5: memref<1x32xf32, #tpu.memory_space<vmem>>, %arg6: memref<8x32xf32, #tpu.memory_space<vmem>>) attributes {dimension_semantics = [#tpu.dimension_semantics<parallel>], iteration_bounds = array<i64: 1>, scalar_prefetch = 0 : i64, scratch_operands = 0 : i64, tpu.core_type = #tpu.core_type<tc>, window_params = [{transform_indices = @transform_0, window_bounds = array<i64: 8, 1>}, {pipeline_mode = #tpu.pipeline_mode<synchronous>, transform_indices = @transform_1, window_bounds = array<i64: 1, 128>}, {pipeline_mode = #tpu.pipeline_mode<synchronous>, transform_indices = @transform_2, window_bounds = array<i64: 1, 128>}, {pipeline_mode = #tpu.pipeline_mode<synchronous>, transform_indices = @transform_3, window_bounds = array<i64: 128, 32>}, {pipeline_mode = #tpu.pipeline_mode<synchronous>, transform_indices = @transform_4, window_bounds = array<i64: 1, 32>}, {transform_indices = @transform_5, window_bounds = array<i64: 8, 32>}]} {
    %c0 = arith.constant 0 : index
    %c0_0 = arith.constant 0 : index
    %0 = vector.load %arg1[%c0, %c0_0] : memref<8x1xf32, #tpu.memory_space<vmem>>, vector<8x1xf32>
    %c0_1 = arith.constant 0 : index
    %c0_2 = arith.constant 0 : index
    %1 = vector.load %arg2[%c0_1, %c0_2] : memref<1x128xf32, #tpu.memory_space<vmem>>, vector<1x128xf32>
    %2 = vector.broadcast %0 : vector<8x1xf32> to vector<8x128xf32>
    %3 = vector.broadcast %1 : vector<1x128xf32> to vector<8x128xf32>
    %4 = arith.mulf %2, %3 : vector<8x128xf32>
    %c0_3 = arith.constant 0 : index
    %c0_4 = arith.constant 0 : index
    %5 = vector.load %arg3[%c0_3, %c0_4] : memref<1x128xf32, #tpu.memory_space<vmem>>, vector<1x128xf32>
    %6 = vector.broadcast %5 : vector<1x128xf32> to vector<8x128xf32>
    %7 = arith.addf %4, %6 : vector<8x128xf32>
    %cst = arith.constant 0.000000e+00 : f32
    %8 = vector.broadcast %cst : f32 to vector<8x128xf32>
    %9 = arith.maximumf %7, %8 : vector<8x128xf32>
    %c0_5 = arith.constant 0 : index
    %c0_6 = arith.constant 0 : index
    %10 = vector.load %arg4[%c0_5, %c0_6] : memref<128x32xf32, #tpu.memory_space<vmem>>, vector<128x32xf32>
    %cst_7 = arith.constant dense<0.000000e+00> : vector<8x32xf32>
    %11 = tpu.matmul %9, %10, %cst_7 {dimension_numbers = #tpu.dot_dimension_numbers<[1], [0], [0], [1], [0, 0, 1, 1], [], []>, precision = #tpu.contract_precision<fp32>} : vector<8x128xf32>, vector<128x32xf32>, vector<8x32xf32> -> vector<8x32xf32>
    %c0_8 = arith.constant 0 : index
    %c0_9 = arith.constant 0 : index
    %12 = vector.load %arg5[%c0_8, %c0_9] : memref<1x32xf32, #tpu.memory_space<vmem>>, vector<1x32xf32>
    %13 = vector.broadcast %12 : vector<1x32xf32> to vector<8x32xf32>
    %14 = arith.addf %11, %13 : vector<8x32xf32>
    %c0_10 = arith.constant 0 : index
    %c0_11 = arith.constant 0 : index
    %15 = vector.load %arg6[%c0_10, %c0_11] : memref<8x32xf32, #tpu.memory_space<vmem>>, vector<8x32xf32>
    tpu.vector_store %arg6[%c0_10, %c0_11], %14 {strides = array<i32>} : memref<8x32xf32, #tpu.memory_space<vmem>>, vector<8x32xf32>,
    return
  }
  func.func @transform_0(%arg0: i32) -> (i32, i32) {
    %c0_i32 = arith.constant 0 : i32
    %c0_i32_0 = arith.constant 0 : i32
    return %arg0, %c0_i32 : i32, i32
  }
  func.func @transform_1(%arg0: i32) -> (i32, i32) {
    %c0_i32 = arith.constant 0 : i32
    %c0_i32_0 = arith.constant 0 : i32
    %c0_i32_1 = arith.constant 0 : i32
    return %c0_i32, %c0_i32_0 : i32, i32
  }
  func.func @transform_2(%arg0: i32) -> (i32, i32) {
    %c0_i32 = arith.constant 0 : i32
    %c0_i32_0 = arith.constant 0 : i32
    %c0_i32_1 = arith.constant 0 : i32
    return %c0_i32, %c0_i32_0 : i32, i32
  }
  func.func @transform_3(%arg0: i32) -> (i32, i32) {
    %c0_i32 = arith.constant 0 : i32
    %c0_i32_0 = arith.constant 0 : i32
    %c0_i32_1 = arith.constant 0 : i32
    return %c0_i32, %c0_i32_0 : i32, i32
  }
  func.func @transform_4(%arg0: i32) -> (i32, i32) {
    %c0_i32 = arith.constant 0 : i32
    %c0_i32_0 = arith.constant 0 : i32
    %c0_i32_1 = arith.constant 0 : i32
    return %c0_i32, %c0_i32_0 : i32, i32
  }
  func.func @transform_5(%arg0: i32) -> (i32, i32) {
    %c0_i32 = arith.constant 0 : i32
    %c0_i32_0 = arith.constant 0 : i32
    return %arg0, %c0_i32 : i32, i32
  }
}

</mosaic_0001>

<llo_original>
// kernel: classical_decoder.1
$region0: #{classical_decoder.1}
  #allocation0 [shape = 'u32[]', space=smem, size = 0x4, offset = 0x4, fixed_abs, tag = 'smem constant byte address 0x4 - core index']
  #allocation1 [shape = 'u32[144,128]{1,0:T(1,128)}', space=vmem, size = 0x12000, scoped, tag = 'internal scratch']
  %s0 = inlined_call_operand.vmem [shape: f32[8,1], index: 0, kind: input, shape index: {}]
  %s1 = inlined_call_operand.vmem [shape: f32[1,128], index: 1, kind: input, shape index: {}]
  %s2 = inlined_call_operand.vmem [shape: f32[1,128], index: 2, kind: input, shape index: {}]
  %s3 = inlined_call_operand.vmem [shape: f32[128,32], index: 3, kind: input, shape index: {}]
  %s4 = inlined_call_operand.vmem [shape: f32[1,32], index: 4, kind: input, shape index: {}]
  %s5 = inlined_call_operand.hbm [shape: f32[8,32], index: 5, kind: output, shape index: {}]
  %s6 = sld [smem:[#allocation0]]
  $region30: #{classical_decoder.1} parent=0
    _
  %s8 = ssub.s32 1, %s6
  %s9 = scalar_select 0, %s8, %s6
  $region1: #{classical_decoder.1} parent=0
    #allocation2 [shape = 'u8[4096]{0}', space=vmem, size = 0x1000, scoped, tag = 'output window, operand 0, single buffered']
    #allocation3 [shape = 's32[1]{0}', space=sflag, size = 0x4, scoped, tag = 'scoped memory for classical_decoder.1']
    %10 = vsyncpa [#allocation3], 0
    // Predicated region
    $region2: #{classical_decoder.1} parent=1 // pred_check
      _
    $region3: #{classical_decoder.1} parent=1 // pred_check_branch
      %12 = sbr.rel (0) target = $region5
    $region4: #{classical_decoder.1} parent=1 // pred_region
      _
    $region5: #{classical_decoder.1} parent=1 // pred_fallthru
      _
    // Predicated region
    $region6: #{classical_decoder.1} parent=1 // pred_check
      _
    $region7: #{classical_decoder.1} parent=1 // pred_check_branch
      %14 = sbr.rel (0) target = $region9
    $region8: #{classical_decoder.1} parent=1 // pred_region
      _
    $region9: #{classical_decoder.1} parent=1 // pred_fallthru
      _
    // Predicated region
    $region10: #{classical_decoder.1} parent=1 // pred_check
      _
    $region11: #{classical_decoder.1} parent=1 // pred_check_branch
      %16 = sbr.rel (0) target = $region13
    $region12: #{classical_decoder.1} parent=1 // pred_region
      _
    $region13: #{classical_decoder.1} parent=1 // pred_fallthru
      _
    // Predicated region
    $region14: #{classical_decoder.1} parent=1 // pred_check
      _
    $region15: #{classical_decoder.1} parent=1 // pred_check_branch
      %18 = sbr.rel (0) target = $region17
    $region16: #{classical_decoder.1} parent=1 // pred_region
      _
    $region17: #{classical_decoder.1} parent=1 // pred_fallthru
      _
    // Predicated region
    $region18: #{classical_decoder.1} parent=1 // pred_check
      _
    $region19: #{classical_decoder.1} parent=1 // pred_check_branch
      %20 = sbr.rel (0) target = $region21
    $region20: #{classical_decoder.1} parent=1 // pred_region
      _
    $region21: #{classical_decoder.1} parent=1 // pred_fallthru
      _
    %v21 = vld [vmem:[%s0] sm:$0xff]
    %v22 = vld [vmem:[%s1] sm:$0x1]
    %24 = vset.pattern.permute.xlu0 0
    %25 = vperm.xlu0 %24, %v21
    %v26 = vpop.permute.xlu0 %25
    %v29 = vlaneseq
    %v30 = vshrl.u32 %v29, 7
    %v31 = vsub.s32 0, %v30
    %v32 = vrot.slane %v22, %v31
    %v34 = vmul.f32 %v26, %v32
    %v35 = vld [vmem:[%s2] sm:$0x1]
    %v37 = vlaneseq
    %v38 = vshrl.u32 %v37, 7
    %v39 = vsub.s32 0, %v38
    %v40 = vrot.slane %v35, %v39
    %v42 = vadd.f32 %v34, %v40
    %v43 = vmax.f32 %v42, 0.0
    %v44 = vld [vmem:[%s3] sm:$0xff]
    %v45 = vld [vmem:[%s3 + $0x8] sm:$0xff]
    %v46 = vld [vmem:[%s3 + $0x10] sm:$0xff]
    %v47 = vld [vmem:[%s3 + $0x18] sm:$0xff]
    %v48 = vld [vmem:[%s3 + $0x20] sm:$0xff]
    %v49 = vld [vmem:[%s3 + $0x28] sm:$0xff]
    %v50 = vld [vmem:[%s3 + $0x30] sm:$0xff]
    %v51 = vld [vmem:[%s3 + $0x38] sm:$0xff]
    %v52 = vld [vmem:[%s3 + $0x40] sm:$0xff]
    %v53 = vld [vmem:[%s3 + $0x48] sm:$0xff]
    %v54 = vld [vmem:[%s3 + $0x50] sm:$0xff]
    %v55 = vld [vmem:[%s3 + $0x58] sm:$0xff]
    %v56 = vld [vmem:[%s3 + $0x60] sm:$0xff]
    %v57 = vld [vmem:[%s3 + $0x68] sm:$0xff]
    %v58 = vld [vmem:[%s3 + $0x70] sm:$0xff]
    %v59 = vld [vmem:[%s3 + $0x78] sm:$0xff]
    %v60 = vld [vmem:[%s4] sm:$0x1]
    %v62 = vlaneseq
    %v63 = vshrl.u32 %v62, 7
    %v64 = vsub.s32 0, %v63
    %v65 = vrot.slane %v60, %v64
    %67 = vmatprep.subr.mxu0 0.0
    %v68 = vand.u32 %v44, 4294901760
    %69 = vmatpush1.msra.mxu0 %v68
    %70 = vmatprep.subr.mxu0 0.0
    %v71 = vand.u32 %v45, 4294901760
    %72 = vmatpush1.msra.mxu0 %v71
    %73 = vmatprep.subr.mxu0 0.0
    %v74 = vand.u32 %v46, 4294901760
    %75 = vmatpush1.msra.mxu0 %v74
    %76 = vmatprep.subr.mxu0 0.0
    %v77 = vand.u32 %v47, 4294901760
    %78 = vmatpush1.msra.mxu0 %v77
    %79 = vmatprep.subr.mxu0 0.0
    %v80 = vand.u32 %v48, 4294901760
    %81 = vmatpush1.msra.mxu0 %v80
    %82 = vmatprep.subr.mxu0 0.0
    %v83 = vand.u32 %v49, 4294901760
    %84 = vmatpush1.msra.mxu0 %v83
    %85 = vmatprep.subr.mxu0 0.0
    %v86 = vand.u32 %v50, 4294901760
    %87 = vmatpush1.msra.mxu0 %v86
    %88 = vmatprep.subr.mxu0 0.0
    %v89 = vand.u32 %v51, 4294901760
    %90 = vmatpush1.msra.mxu0 %v89
    %91 = vmatprep.subr.mxu0 0.0
    %v92 = vand.u32 %v52, 4294901760
    %93 = vmatpush1.msra.mxu0 %v92
    %94 = vmatprep.subr.mxu0 0.0
    %v95 = vand.u32 %v53, 4294901760
    %96 = vmatpush1.msra.mxu0 %v95
    %97 = vmatprep.subr.mxu0 0.0
    %v98 = vand.u32 %v54, 4294901760
    %99 = vmatpush1.msra.mxu0 %v98
    %100 = vmatprep.subr.mxu0 0.0
    %v101 = vand.u32 %v55, 4294901760
    %102 = vmatpush1.msra.mxu0 %v101
    %103 = vmatprep.subr.mxu0 0.0
    %v104 = vand.u32 %v56, 4294901760
    %105 = vmatpush1.msra.mxu0 %v104
    %106 = vmatprep.subr.mxu0 0.0
    %v107 = vand.u32 %v57, 4294901760
    %108 = vmatpush1.msra.mxu0 %v107
    %109 = vmatprep.subr.mxu0 0.0
    %v110 = vand.u32 %v58, 4294901760
    %111 = vmatpush1.msra.mxu0 %v110
    %112 = vmatprep.subr.mxu0 0.0
    %v113 = vand.u32 %v59, 4294901760
    %114 = vmatpush1.msra.mxu0 %v113
    %115 = vmatprep.subr.mxu0 0.0
    %116 = vmatpush1.msra.mxu0 0.0
    %117 = vmatprep.subr.mxu0 0.0
    %118 = vmatpush1.msra.mxu0 0.0
    %119 = vmatprep.subr.mxu0 0.0
    %120 = vmatpush1.msra.mxu0 0.0
    %121 = vmatprep.subr.mxu0 0.0
    %122 = vmatpush1.msra.mxu0 0.0
    %123 = vmatprep.subr.mxu0 0.0
    %124 = vmatpush1.msra.mxu0 0.0
    %125 = vmatprep.subr.mxu0 0.0
    %126 = vmatpush1.msra.mxu0 0.0
    %127 = vmatprep.subr.mxu0 0.0
    %128 = vmatpush1.msra.mxu0 0.0
    %129 = vmatprep.subr.mxu0 0.0
    %130 = vmatpush1.msra.mxu0 0.0
    %131 = vmatprep.subr.mxu0 0.0
    %132 = vmatpush1.msra.mxu0 0.0
    %133 = vmatprep.subr.mxu0 0.0
    %134 = vmatpush1.msra.mxu0 0.0
    %135 = vmatprep.subr.mxu0 0.0
    %136 = vmatpush1.msra.mxu0 0.0
    %137 = vmatprep.subr.mxu0 0.0
    %138 = vmatpush1.msra.mxu0 0.0
    %139 = vmatprep.subr.mxu0 0.0
    %140 = vmatpush1.msra.mxu0 0.0
    %141 = vmatprep.subr.mxu0 0.0
    %142 = vmatpush1.msra.mxu0 0.0
    %143 = vmatprep.subr.mxu0 0.0
    %144 = vmatpush1.msra.mxu0 0.0
    %145 = vmatprep.subr.mxu0 0.0
    %146 = vmatpush1.msra.mxu0 0.0
    %147 = vmatprep.mubr.f32.mxu0 0.0
    %v148 = vand.u32 %v43, 4294901760
    %v149 = vsub.f32 %v43, %v148
    %v150 = vand.u32 %v149, 4294901760
    %v151 = vsub.f32 %v149, %v150
    %v152 = vand.u32 %v151, 4294901760
    %153 = vmatmul.mubr.f32.gmra.mrb[0].mxu0 %v152
    %v154 = vpop.f32.mrb[0].mxu0
    %v155 = vadd.f32 %v65, %v154
    %v156 = vpop.f32.mrb[0].mxu0
    %157 = vdwg.mxu0
    %158 = vmatprep.subr.mxu0 0.0
    %v159 = vand.u32 %v44, 4294901760
    %v160 = vsub.f32 %v44, %v159
    %v161 = vand.u32 %v160, 4294901760
    %v162 = vsub.f32 %v160, %v161
    %v163 = vand.u32 %v162, 4294901760
    %164 = vmatpush1.msra.mxu0 %v163
    %165 = vmatprep.subr.mxu0 0.0
    %v166 = vand.u32 %v45, 4294901760
    %v167 = vsub.f32 %v45, %v166
    %v168 = vand.u32 %v167, 4294901760
    %v169 = vsub.f32 %v167, %v168
    %v170 = vand.u32 %v169, 4294901760
    %171 = vmatpush1.msra.mxu0 %v170
    %172 = vmatprep.subr.mxu0 0.0
    %v173 = vand.u32 %v46, 4294901760
    %v174 = vsub.f32 %v46, %v173
    %v175 = vand.u32 %v174, 4294901760
    %v176 = vsub.f32 %v174, %v175
    %v177 = vand.u32 %v176, 4294901760
    %178 = vmatpush1.msra.mxu0 %v177
    %179 = vmatprep.subr.mxu0 0.0
    %v180 = vand.u32 %v47, 4294901760
    %v181 = vsub.f32 %v47, %v180
    %v182 = vand.u32 %v181, 4294901760
    %v183 = vsub.f32 %v181, %v182
    %v184 = vand.u32 %v183, 4294901760
    %185 = vmatpush1.msra.mxu0 %v184
    %186 = vmatprep.subr.mxu0 0.0
    %v187 = vand.u32 %v48, 4294901760
    %v188 = vsub.f32 %v48, %v187
    %v189 = vand.u32 %v188, 4294901760
    %v190 = vsub.f32 %v188, %v189
    %v191 = vand.u32 %v190, 4294901760
    %192 = vmatpush1.msra.mxu0 %v191
    %193 = vmatprep.subr.mxu0 0.0
    %v194 = vand.u32 %v49, 4294901760
    %v195 = vsub.f32 %v49, %v194
    %v196 = vand.u32 %v195, 4294901760
    %v197 = vsub.f32 %v195, %v196
    %v198 = vand.u32 %v197, 4294901760
    %199 = vmatpush1.msra.mxu0 %v198
    %200 = vmatprep.subr.mxu0 0.0
    %v201 = vand.u32 %v50, 4294901760
    %v202 = vsub.f32 %v50, %v201
    %v203 = vand.u32 %v202, 4294901760
    %v204 = vsub.f32 %v202, %v203
    %v205 = vand.u32 %v204, 4294901760
    %206 = vmatpush1.msra.mxu0 %v205
    %207 = vmatprep.subr.mxu0 0.0
    %v208 = vand.u32 %v51, 4294901760
    %v209 = vsub.f32 %v51, %v208
    %v210 = vand.u32 %v209, 4294901760
    %v211 = vsub.f32 %v209, %v210
    %v212 = vand.u32 %v211, 4294901760
    %213 = vmatpush1.msra.mxu0 %v212
    %214 = vmatprep.subr.mxu0 0.0
    %v215 = vand.u32 %v52, 4294901760
    %v216 = vsub.f32 %v52, %v215
    %v217 = vand.u32 %v216, 4294901760
    %v218 = vsub.f32 %v216, %v217
    %v219 = vand.u32 %v218, 4294901760
    %220 = vmatpush1.msra.mxu0 %v219
    %221 = vmatprep.subr.mxu0 0.0
    %v222 = vand.u32 %v53, 4294901760
    %v223 = vsub.f32 %v53, %v222
    %v224 = vand.u32 %v223, 4294901760
    %v225 = vsub.f32 %v223, %v224
    %v226 = vand.u32 %v225, 4294901760
    %227 = vmatpush1.msra.mxu0 %v226
    %228 = vmatprep.subr.mxu0 0.0
    %v229 = vand.u32 %v54, 4294901760
    %v230 = vsub.f32 %v54, %v229
    %v231 = vand.u32 %v230, 4294901760
    %v232 = vsub.f32 %v230, %v231
    %v233 = vand.u32 %v232, 4294901760
    %234 = vmatpush1.msra.mxu0 %v233
    %235 = vmatprep.subr.mxu0 0.0
    %v236 = vand.u32 %v55, 4294901760
    %v237 = vsub.f32 %v55, %v236
    %v238 = vand.u32 %v237, 4294901760
    %v239 = vsub.f32 %v237, %v238
    %v240 = vand.u32 %v239, 4294901760
    %241 = vmatpush1.msra.mxu0 %v240
    %242 = vmatprep.subr.mxu0 0.0
    %v243 = vand.u32 %v56, 4294901760
    %v244 = vsub.f32 %v56, %v243
    %v245 = vand.u32 %v244, 4294901760
    %v246 = vsub.f32 %v244, %v245
    %v247 = vand.u32 %v246, 4294901760
    %248 = vmatpush1.msra.mxu0 %v247
    %249 = vmatprep.subr.mxu0 0.0
    %v250 = vand.u32 %v57, 4294901760
    %v251 = vsub.f32 %v57, %v250
    %v252 = vand.u32 %v251, 4294901760
    %v253 = vsub.f32 %v251, %v252
    %v254 = vand.u32 %v253, 4294901760
    %255 = vmatpush1.msra.mxu0 %v254
    %256 = vmatprep.subr.mxu0 0.0
    %v257 = vand.u32 %v58, 4294901760
    %v258 = vsub.f32 %v58, %v257
    %v259 = vand.u32 %v258, 4294901760
    %v260 = vsub.f32 %v258, %v259
    %v261 = vand.u32 %v260, 4294901760
    %262 = vmatpush1.msra.mxu0 %v261
    %263 = vmatprep.subr.mxu0 0.0
    %v264 = vand.u32 %v59, 4294901760
    %v265 = vsub.f32 %v59, %v264
    %v266 = vand.u32 %v265, 4294901760
    %v267 = vsub.f32 %v265, %v266
    %v268 = vand.u32 %v267, 4294901760
    %269 = vmatpush1.msra.mxu0 %v268
    %270 = vmatprep.subr.mxu0 0.0
    %271 = vmatpush1.msra.mxu0 0.0
    %272 = vmatprep.subr.mxu0 0.0
    %273 = vmatpush1.msra.mxu0 0.0
    %274 = vmatprep.subr.mxu0 0.0
    %275 = vmatpush1.msra.mxu0 0.0
    %276 = vmatprep.subr.mxu0 0.0
    %277 = vmatpush1.msra.mxu0 0.0
    %278 = vmatprep.subr.mxu0 0.0
    %279 = vmatpush1.msra.mxu0 0.0
    %280 = vmatprep.subr.mxu0 0.0
    %281 = vmatpush1.msra.mxu0 0.0
    %282 = vmatprep.subr.mxu0 0.0
    %283 = vmatpush1.msra.mxu0 0.0
    %284 = vmatprep.subr.mxu0 0.0
    %285 = vmatpush1.msra.mxu0 0.0
    %286 = vmatprep.subr.mxu0 0.0
    %287 = vmatpush1.msra.mxu0 0.0
    %288 = vmatprep.subr.mxu0 0.0
    %289 = vmatpush1.msra.mxu0 0.0
    %290 = vmatprep.subr.mxu0 0.0
    %291 = vmatpush1.msra.mxu0 0.0
    %292 = vmatprep.subr.mxu0 0.0
    %293 = vmatpush1.msra.mxu0 0.0
    %294 = vmatprep.subr.mxu0 0.0
    %295 = vmatpush1.msra.mxu0 0.0
    %296 = vmatprep.subr.mxu0 0.0
    %297 = vmatpush1.msra.mxu0 0.0
    %298 = vmatprep.subr.mxu0 0.0
    %299 = vmatpush1.msra.mxu0 0.0
    %300 = vmatprep.subr.mxu0 0.0
    %301 = vmatpush1.msra.mxu0 0.0
    %302 = vmatprep.mubr.f32.mxu0 0.0
    %v303 = vand.u32 %v43, 4294901760
    %304 = vmatmul.mubr.f32.gmra.mrb[0].mxu0 %v303
    %v305 = vpop.f32.mrb[0].mxu0
    %v306 = vadd.f32 %v155, %v305
    %v307 = vpop.f32.mrb[0].mxu0
    %308 = vdwg.mxu0
    %309 = vmatprep.subr.mxu0 0.0
    %v310 = vand.u32 %v44, 4294901760
    %v311 = vsub.f32 %v44, %v310
    %312 = vmatpush1.msra.mxu0 %v311
    %313 = vmatprep.subr.mxu0 0.0
    %v314 = vand.u32 %v45, 4294901760
    %v315 = vsub.f32 %v45, %v314
    %316 = vmatpush1.msra.mxu0 %v315
    %317 = vmatprep.subr.mxu0 0.0
    %v318 = vand.u32 %v46, 4294901760
    %v319 = vsub.f32 %v46, %v318
    %320 = vmatpush1.msra.mxu0 %v319
    %321 = vmatprep.subr.mxu0 0.0
    %v322 = vand.u32 %v47, 4294901760
    %v323 = vsub.f32 %v47, %v322
    %324 = vmatpush1.msra.mxu0 %v323
    %325 = vmatprep.subr.mxu0 0.0
    %v326 = vand.u32 %v48, 4294901760
    %v327 = vsub.f32 %v48, %v326
    %328 = vmatpush1.msra.mxu0 %v327
    %329 = vmatprep.subr.mxu0 0.0
    %v330 = vand.u32 %v49, 4294901760
    %v331 = vsub.f32 %v49, %v330
    %332 = vmatpush1.msra.mxu0 %v331
    %333 = vmatprep.subr.mxu0 0.0
    %v334 = vand.u32 %v50, 4294901760
    %v335 = vsub.f32 %v50, %v334
    %336 = vmatpush1.msra.mxu0 %v335
    %337 = vmatprep.subr.mxu0 0.0
    %v338 = vand.u32 %v51, 4294901760
    %v339 = vsub.f32 %v51, %v338
    %340 = vmatpush1.msra.mxu0 %v339
    %341 = vmatprep.subr.mxu0 0.0
    %v342 = vand.u32 %v52, 4294901760
    %v343 = vsub.f32 %v52, %v342
    %344 = vmatpush1.msra.mxu0 %v343
    %345 = vmatprep.subr.mxu0 0.0
    %v346 = vand.u32 %v53, 4294901760
    %v347 = vsub.f32 %v53, %v346
    %348 = vmatpush1.msra.mxu0 %v347
    %349 = vmatprep.subr.mxu0 0.0
    %v350 = vand.u32 %v54, 4294901760
    %v351 = vsub.f32 %v54, %v350
    %352 = vmatpush1.msra.mxu0 %v351
    %353 = vmatprep.subr.mxu0 0.0
    %v354 = vand.u32 %v55, 4294901760
    %v355 = vsub.f32 %v55, %v354
    %356 = vmatpush1.msra.mxu0 %v355
    %357 = vmatprep.subr.mxu0 0.0
    %v358 = vand.u32 %v56, 4294901760
    %v359 = vsub.f32 %v56, %v358
    %360 = vmatpush1.msra.mxu0 %v359
    %361 = vmatprep.subr.mxu0 0.0
    %v362 = vand.u32 %v57, 4294901760
    %v363 = vsub.f32 %v57, %v362
    %364 = vmatpush1.msra.mxu0 %v363
    %365 = vmatprep.subr.mxu0 0.0
    %v366 = vand.u32 %v58, 4294901760
    %v367 = vsub.f32 %v58, %v366
    %368 = vmatpush1.msra.mxu0 %v367
    %369 = vmatprep.subr.mxu0 0.0
    %v370 = vand.u32 %v59, 4294901760
    %v371 = vsub.f32 %v59, %v370
    %372 = vmatpush1.msra.mxu0 %v371
    %373 = vmatprep.subr.mxu0 0.0
    %374 = vmatpush1.msra.mxu0 0.0
    %375 = vmatprep.subr.mxu0 0.0
    %376 = vmatpush1.msra.mxu0 0.0
    %377 = vmatprep.subr.mxu0 0.0
    %378 = vmatpush1.msra.mxu0 0.0
    %379 = vmatprep.subr.mxu0 0.0
    %380 = vmatpush1.msra.mxu0 0.0
    %381 = vmatprep.subr.mxu0 0.0
    %382 = vmatpush1.msra.mxu0 0.0
    %383 = vmatprep.subr.mxu0 0.0
    %384 = vmatpush1.msra.mxu0 0.0
    %385 = vmatprep.subr.mxu0 0.0
    %386 = vmatpush1.msra.mxu0 0.0
    %387 = vmatprep.subr.mxu0 0.0
    %388 = vmatpush1.msra.mxu0 0.0
    %389 = vmatprep.subr.mxu0 0.0
    %390 = vmatpush1.msra.mxu0 0.0
    %391 = vmatprep.subr.mxu0 0.0
    %392 = vmatpush1.msra.mxu0 0.0
    %393 = vmatprep.subr.mxu0 0.0
    %394 = vmatpush1.msra.mxu0 0.0
    %395 = vmatprep.subr.mxu0 0.0
    %396 = vmatpush1.msra.mxu0 0.0
    %397 = vmatprep.subr.mxu0 0.0
    %398 = vmatpush1.msra.mxu0 0.0
    %399 = vmatprep.subr.mxu0 0.0
    %400 = vmatpush1.msra.mxu0 0.0
    %401 = vmatprep.subr.mxu0 0.0
    %402 = vmatpush1.msra.mxu0 0.0
    %403 = vmatprep.subr.mxu0 0.0
    %404 = vmatpush1.msra.mxu0 0.0
    %405 = vmatprep.mubr.f32.mxu0 0.0
    %v406 = vand.u32 %v43, 4294901760
    %v407 = vsub.f32 %v43, %v406
    %408 = vmatmul.mubr.f32.gmra.mrb[0].mxu0 %v407
    %v409 = vpop.f32.mrb[0].mxu0
    %v410 = vadd.f32 %v306, %v409
    %v411 = vpop.f32.mrb[0].mxu0
    %412 = vdwg.mxu0
    %413 = vmatprep.subr.mxu0 0.0
    %v414 = vand.u32 %v44, 4294901760
    %415 = vmatpush1.msra.mxu0 %v414
    %416 = vmatprep.subr.mxu0 0.0
    %v417 = vand.u32 %v45, 4294901760
    %418 = vmatpush1.msra.mxu0 %v417
    %419 = vmatprep.subr.mxu0 0.0
    %v420 = vand.u32 %v46, 4294901760
    %421 = vmatpush1.msra.mxu0 %v420
    %422 = vmatprep.subr.mxu0 0.0
    %v423 = vand.u32 %v47, 4294901760
    %424 = vmatpush1.msra.mxu0 %v423
    %425 = vmatprep.subr.mxu0 0.0
    %v426 = vand.u32 %v48, 4294901760
    %427 = vmatpush1.msra.mxu0 %v426
    %428 = vmatprep.subr.mxu0 0.0
    %v429 = vand.u32 %v49, 4294901760
    %430 = vmatpush1.msra.mxu0 %v429
    %431 = vmatprep.subr.mxu0 0.0
    %v432 = vand.u32 %v50, 4294901760
    %433 = vmatpush1.msra.mxu0 %v432
    %434 = vmatprep.subr.mxu0 0.0
    %v435 = vand.u32 %v51, 4294901760
    %436 = vmatpush1.msra.mxu0 %v435
    %437 = vmatprep.subr.mxu0 0.0
    %v438 = vand.u32 %v52, 4294901760
    %439 = vmatpush1.msra.mxu0 %v438
    %440 = vmatprep.subr.mxu0 0.0
    %v441 = vand.u32 %v53, 4294901760
    %442 = vmatpush1.msra.mxu0 %v441
    %443 = vmatprep.subr.mxu0 0.0
    %v444 = vand.u32 %v54, 4294901760
    %445 = vmatpush1.msra.mxu0 %v444
    %446 = vmatprep.subr.mxu0 0.0
    %v447 = vand.u32 %v55, 4294901760
    %448 = vmatpush1.msra.mxu0 %v447
    %449 = vmatprep.subr.mxu0 0.0
    %v450 = vand.u32 %v56, 4294901760
    %451 = vmatpush1.msra.mxu0 %v450
    %452 = vmatprep.subr.mxu0 0.0
    %v453 = vand.u32 %v57, 4294901760
    %454 = vmatpush1.msra.mxu0 %v453
    %455 = vmatprep.subr.mxu0 0.0
    %v456 = vand.u32 %v58, 4294901760
    %457 = vmatpush1.msra.mxu0 %v456
    %458 = vmatprep.subr.mxu0 0.0
    %v459 = vand.u32 %v59, 4294901760
    %460 = vmatpush1.msra.mxu0 %v459
    %461 = vmatprep.subr.mxu0 0.0
    %462 = vmatpush1.msra.mxu0 0.0
    %463 = vmatprep.subr.mxu0 0.0
    %464 = vmatpush1.msra.mxu0 0.0
    %465 = vmatprep.subr.mxu0 0.0
    %466 = vmatpush1.msra.mxu0 0.0
    %467 = vmatprep.subr.mxu0 0.0
    %468 = vmatpush1.msra.mxu0 0.0
    %469 = vmatprep.subr.mxu0 0.0
    %470 = vmatpush1.msra.mxu0 0.0
    %471 = vmatprep.subr.mxu0 0.0
    %472 = vmatpush1.msra.mxu0 0.0
    %473 = vmatprep.subr.mxu0 0.0
    %474 = vmatpush1.msra.mxu0 0.0
    %475 = vmatprep.subr.mxu0 0.0
    %476 = vmatpush1.msra.mxu0 0.0
    %477 = vmatprep.subr.mxu0 0.0
    %478 = vmatpush1.msra.mxu0 0.0
    %479 = vmatprep.subr.mxu0 0.0
    %480 = vmatpush1.msra.mxu0 0.0
    %481 = vmatprep.subr.mxu0 0.0
    %482 = vmatpush1.msra.mxu0 0.0
    %483 = vmatprep.subr.mxu0 0.0
    %484 = vmatpush1.msra.mxu0 0.0
    %485 = vmatprep.subr.mxu0 0.0
    %486 = vmatpush1.msra.mxu0 0.0
    %487 = vmatprep.subr.mxu0 0.0
    %488 = vmatpush1.msra.mxu0 0.0
    %489 = vmatprep.subr.mxu0 0.0
    %490 = vmatpush1.msra.mxu0 0.0
    %491 = vmatprep.subr.mxu0 0.0
    %492 = vmatpush1.msra.mxu0 0.0
    %493 = vmatprep.mubr.f32.mxu0 0.0
    %v494 = vand.u32 %v43, 4294901760
    %v495 = vsub.f32 %v43, %v494
    %v496 = vand.u32 %v495, 4294901760
    %497 = vmatmul.mubr.f32.gmra.mrb[0].mxu0 %v496
    %v498 = vpop.f32.mrb[0].mxu0
    %v499 = vadd.f32 %v410, %v498
    %v500 = vpop.f32.mrb[0].mxu0
    %501 = vdwg.mxu0
    %502 = vmatprep.subr.mxu0 0.0
    %v503 = vand.u32 %v44, 4294901760
    %v504 = vsub.f32 %v44, %v503
    %v505 = vand.u32 %v504, 4294901760
    %506 = vmatpush1.msra.mxu0 %v505
    %507 = vmatprep.subr.mxu0 0.0
    %v508 = vand.u32 %v45, 4294901760
    %v509 = vsub.f32 %v45, %v508
    %v510 = vand.u32 %v509, 4294901760
    %511 = vmatpush1.msra.mxu0 %v510
    %512 = vmatprep.subr.mxu0 0.0
    %v513 = vand.u32 %v46, 4294901760
    %v514 = vsub.f32 %v46, %v513
    %v515 = vand.u32 %v514, 4294901760
    %516 = vmatpush1.msra.mxu0 %v515
    %517 = vmatprep.subr.mxu0 0.0
    %v518 = vand.u32 %v47, 4294901760
    %v519 = vsub.f32 %v47, %v518
    %v520 = vand.u32 %v519, 4294901760
    %521 = vmatpush1.msra.mxu0 %v520
    %522 = vmatprep.subr.mxu0 0.0
    %v523 = vand.u32 %v48, 4294901760
    %v524 = vsub.f32 %v48, %v523
    %v525 = vand.u32 %v524, 4294901760
    %526 = vmatpush1.msra.mxu0 %v525
    %527 = vmatprep.subr.mxu0 0.0
    %v528 = vand.u32 %v49, 4294901760
    %v529 = vsub.f32 %v49, %v528
    %v530 = vand.u32 %v529, 4294901760
    %531 = vmatpush1.msra.mxu0 %v530
    %532 = vmatprep.subr.mxu0 0.0
    %v533 = vand.u32 %v50, 4294901760
    %v534 = vsub.f32 %v50, %v533
    %v535 = vand.u32 %v534, 4294901760
    %536 = vmatpush1.msra.mxu0 %v535
    %537 = vmatprep.subr.mxu0 0.0
    %v538 = vand.u32 %v51, 4294901760
    %v539 = vsub.f32 %v51, %v538
    %v540 = vand.u32 %v539, 4294901760
    %541 = vmatpush1.msra.mxu0 %v540
    %542 = vmatprep.subr.mxu0 0.0
    %v543 = vand.u32 %v52, 4294901760
    %v544 = vsub.f32 %v52, %v543
    %v545 = vand.u32 %v544, 4294901760
    %546 = vmatpush1.msra.mxu0 %v545
    %547 = vmatprep.subr.mxu0 0.0
    %v548 = vand.u32 %v53, 4294901760
    %v549 = vsub.f32 %v53, %v548
    %v550 = vand.u32 %v549, 4294901760
    %551 = vmatpush1.msra.mxu0 %v550
    %552 = vmatprep.subr.mxu0 0.0
    %v553 = vand.u32 %v54, 4294901760
    %v554 = vsub.f32 %v54, %v553
    %v555 = vand.u32 %v554, 4294901760
    %556 = vmatpush1.msra.mxu0 %v555
    %557 = vmatprep.subr.mxu0 0.0
    %v558 = vand.u32 %v55, 4294901760
    %v559 = vsub.f32 %v55, %v558
    %v560 = vand.u32 %v559, 4294901760
    %561 = vmatpush1.msra.mxu0 %v560
    %562 = vmatprep.subr.mxu0 0.0
    %v563 = vand.u32 %v56, 4294901760
    %v564 = vsub.f32 %v56, %v563
    %v565 = vand.u32 %v564, 4294901760
    %566 = vmatpush1.msra.mxu0 %v565
    %567 = vmatprep.subr.mxu0 0.0
    %v568 = vand.u32 %v57, 4294901760
    %v569 = vsub.f32 %v57, %v568
    %v570 = vand.u32 %v569, 4294901760
    %571 = vmatpush1.msra.mxu0 %v570
    %572 = vmatprep.subr.mxu0 0.0
    %v573 = vand.u32 %v58, 4294901760
    %v574 = vsub.f32 %v58, %v573
    %v575 = vand.u32 %v574, 4294901760
    %576 = vmatpush1.msra.mxu0 %v575
    %577 = vmatprep.subr.mxu0 0.0
    %v578 = vand.u32 %v59, 4294901760
    %v579 = vsub.f32 %v59, %v578
    %v580 = vand.u32 %v579, 4294901760
    %581 = vmatpush1.msra.mxu0 %v580
    %582 = vmatprep.subr.mxu0 0.0
    %583 = vmatpush1.msra.mxu0 0.0
    %584 = vmatprep.subr.mxu0 0.0
    %585 = vmatpush1.msra.mxu0 0.0
    %586 = vmatprep.subr.mxu0 0.0
    %587 = vmatpush1.msra.mxu0 0.0
    %588 = vmatprep.subr.mxu0 0.0
    %589 = vmatpush1.msra.mxu0 0.0
    %590 = vmatprep.subr.mxu0 0.0
    %591 = vmatpush1.msra.mxu0 0.0
    %592 = vmatprep.subr.mxu0 0.0
    %593 = vmatpush1.msra.mxu0 0.0
    %594 = vmatprep.subr.mxu0 0.0
    %595 = vmatpush1.msra.mxu0 0.0
    %596 = vmatprep.subr.mxu0 0.0
    %597 = vmatpush1.msra.mxu0 0.0
    %598 = vmatprep.subr.mxu0 0.0
    %599 = vmatpush1.msra.mxu0 0.0
    %600 = vmatprep.subr.mxu0 0.0
    %601 = vmatpush1.msra.mxu0 0.0
    %602 = vmatprep.subr.mxu0 0.0
    %603 = vmatpush1.msra.mxu0 0.0
    %604 = vmatprep.subr.mxu0 0.0
    %605 = vmatpush1.msra.mxu0 0.0
    %606 = vmatprep.subr.mxu0 0.0
    %607 = vmatpush1.msra.mxu0 0.0
    %608 = vmatprep.subr.mxu0 0.0
    %609 = vmatpush1.msra.mxu0 0.0
    %610 = vmatprep.subr.mxu0 0.0
    %611 = vmatpush1.msra.mxu0 0.0
    %612 = vmatprep.subr.mxu0 0.0
    %613 = vmatpush1.msra.mxu0 0.0
    %614 = vmatprep.mubr.f32.mxu0 0.0
    %v615 = vand.u32 %v43, 4294901760
    %616 = vmatmul.mubr.f32.gmra.mrb[0].mxu0 %v615
    %v617 = vpop.f32.mrb[0].mxu0
    %v618 = vadd.f32 %v499, %v617
    %v619 = vpop.f32.mrb[0].mxu0
    %620 = vdwg.mxu0
    %621 = vmatprep.subr.mxu0 0.0
    %v622 = vand.u32 %v44, 4294901760
    %623 = vmatpush1.msra.mxu0 %v622
    %624 = vmatprep.subr.mxu0 0.0
    %v625 = vand.u32 %v45, 4294901760
    %626 = vmatpush1.msra.mxu0 %v625
    %627 = vmatprep.subr.mxu0 0.0
    %v628 = vand.u32 %v46, 4294901760
    %629 = vmatpush1.msra.mxu0 %v628
    %630 = vmatprep.subr.mxu0 0.0
    %v631 = vand.u32 %v47, 4294901760
    %632 = vmatpush1.msra.mxu0 %v631
    %633 = vmatprep.subr.mxu0 0.0
    %v634 = vand.u32 %v48, 4294901760
    %635 = vmatpush1.msra.mxu0 %v634
    %636 = vmatprep.subr.mxu0 0.0
    %v637 = vand.u32 %v49, 4294901760
    %638 = vmatpush1.msra.mxu0 %v637
    %639 = vmatprep.subr.mxu0 0.0
    %v640 = vand.u32 %v50, 4294901760
    %641 = vmatpush1.msra.mxu0 %v640
    %642 = vmatprep.subr.mxu0 0.0
    %v643 = vand.u32 %v51, 4294901760
    %644 = vmatpush1.msra.mxu0 %v643
    %645 = vmatprep.subr.mxu0 0.0
    %v646 = vand.u32 %v52, 4294901760
    %647 = vmatpush1.msra.mxu0 %v646
    %648 = vmatprep.subr.mxu0 0.0
    %v649 = vand.u32 %v53, 4294901760
    %650 = vmatpush1.msra.mxu0 %v649
    %651 = vmatprep.subr.mxu0 0.0
    %v652 = vand.u32 %v54, 4294901760
    %653 = vmatpush1.msra.mxu0 %v652
    %654 = vmatprep.subr.mxu0 0.0
    %v655 = vand.u32 %v55, 4294901760
    %656 = vmatpush1.msra.mxu0 %v655
    %657 = vmatprep.subr.mxu0 0.0
    %v658 = vand.u32 %v56, 4294901760
    %659 = vmatpush1.msra.mxu0 %v658
    %660 = vmatprep.subr.mxu0 0.0
    %v661 = vand.u32 %v57, 4294901760
    %662 = vmatpush1.msra.mxu0 %v661
    %663 = vmatprep.subr.mxu0 0.0
    %v664 = vand.u32 %v58, 4294901760
    %665 = vmatpush1.msra.mxu0 %v664
    %666 = vmatprep.subr.mxu0 0.0
    %v667 = vand.u32 %v59, 4294901760
    %668 = vmatpush1.msra.mxu0 %v667
    %669 = vmatprep.subr.mxu0 0.0
    %670 = vmatpush1.msra.mxu0 0.0
    %671 = vmatprep.subr.mxu0 0.0
    %672 = vmatpush1.msra.mxu0 0.0
    %673 = vmatprep.subr.mxu0 0.0
    %674 = vmatpush1.msra.mxu0 0.0
    %675 = vmatprep.subr.mxu0 0.0
    %676 = vmatpush1.msra.mxu0 0.0
    %677 = vmatprep.subr.mxu0 0.0
    %678 = vmatpush1.msra.mxu0 0.0
    %679 = vmatprep.subr.mxu0 0.0
    %680 = vmatpush1.msra.mxu0 0.0
    %681 = vmatprep.subr.mxu0 0.0
    %682 = vmatpush1.msra.mxu0 0.0
    %683 = vmatprep.subr.mxu0 0.0
    %684 = vmatpush1.msra.mxu0 0.0
    %685 = vmatprep.subr.mxu0 0.0
    %686 = vmatpush1.msra.mxu0 0.0
    %687 = vmatprep.subr.mxu0 0.0
    %688 = vmatpush1.msra.mxu0 0.0
    %689 = vmatprep.subr.mxu0 0.0
    %690 = vmatpush1.msra.mxu0 0.0
    %691 = vmatprep.subr.mxu0 0.0
    %692 = vmatpush1.msra.mxu0 0.0
    %693 = vmatprep.subr.mxu0 0.0
    %694 = vmatpush1.msra.mxu0 0.0
    %695 = vmatprep.subr.mxu0 0.0
    %696 = vmatpush1.msra.mxu0 0.0
    %697 = vmatprep.subr.mxu0 0.0
    %698 = vmatpush1.msra.mxu0 0.0
    %699 = vmatprep.subr.mxu0 0.0
    %700 = vmatpush1.msra.mxu0 0.0
    %701 = vmatprep.mubr.f32.mxu0 0.0
    %v702 = vand.u32 %v43, 4294901760
    %703 = vmatmul.mubr.f32.gmra.mrb[0].mxu0 %v702
    %v704 = vpop.f32.mrb[0].mxu0
    %v705 = vadd.f32 %v618, %v704
    %v706 = vpop.f32.mrb[0].mxu0
    %707 = vdwg.mxu0
    %vm708 = vcmask 261120
    %709 = vst.msk [vmem:[#allocation2] sm:$0xff] %vm708, %v705
    // Predicated region
    $region22: #{classical_decoder.1} parent=1 // pred_check
      _
    $region23: #{classical_decoder.1} parent=1 // pred_check_branch
      %711 = sbr.rel (0) target = $region25
    $region24: #{classical_decoder.1} parent=1 // pred_region
      %s713 = ssub.s32 128, 128
      %714 = vsyncadd [#allocation3], %s713
      %s716 = sshll.u32 [#allocation2], 4
      %s717 = int_to_ptr.vmem [resolvable:$true] %s716
      %719 = dma.vmem_to_hbm [thread:$0]  %s717, 128, %s5, [#allocation3]
    $region25: #{classical_decoder.1} parent=1 // pred_fallthru
      _
    // Predicated region
    $region26: #{classical_decoder.1} parent=1 // pred_check
      _
    $region27: #{classical_decoder.1} parent=1 // pred_check_branch
      %721 = sbr.rel (0) target = $region29
    $region28: #{classical_decoder.1} parent=1 // pred_region
      %722 = dma.done [#allocation3], 128
    $region29: #{classical_decoder.1} parent=1 // pred_fallthru
      _
    %723 = vsyncpa [#allocation3], 1

</llo_original>
